<compile_context>
chip_gen: v7x
topology: tpu7x:2x2x1
jax: 0.10.0
libtpu: 0.0.40
codegen_flags: <defaults>
</compile_context>

<pallas_src>
import functools

import jax
import jax.numpy as jnp
from jax.experimental import pallas as pl
from jax.experimental.pallas import tpu as pltpu


def _fromrgb_kernel(x_ref, w_ref, b_ref, o_ref, *, neg_slope, bt):
    # x_ref: (bt, C_in, T)   spatial tile(s), channels on sublanes, lanes = T
    # w_ref: (C_out, C_in)   scale-folded weight, f32
    # b_ref: (C_out, 1)      bias, f32
    # o_ref: (bt, C_out, T)  output tile (lane-dense)
    w = w_ref[...]                                   # (C_out, C_in) f32
    b = b_ref[...]                                   # (C_out, 1)    f32
    for i in range(bt):                              # bt is small & static
        x = x_ref[i].astype(jnp.float32)             # (C_in, T)
        # K = C_in contraction on the MXU; op is HBM-bound so MXU slot is free.
        acc = jnp.dot(w, x, preferred_element_type=jnp.float32) + b
        # LeakyReLU as mul+max (cheaper than cmp+mul+select); valid for 0<slope<1.
        o_ref[i] = jnp.maximum(acc, neg_slope * acc).astype(o_ref.dtype)


def _round_up(x, m):
    return ((x + m - 1) // m) * m


def _pick_tiles(n, hw, c_in, c_out, *, lane_cap=32768, vmem_budget=20 * 1024 * 1024):
    """Choose (batch_tile, spatial_tile, padded_hw).

    The spatial tile is bounded both by `lane_cap` lanes and by a VMEM budget
    for the double-buffered (input + output) working set at the real channel
    counts, so large C_out never blows past v7x's 64 MiB VMEM.
    """
    cin_p = _round_up(max(c_in, 1), 8)
    cout_p = _round_up(max(c_out, 1), 8)
    bytes_per_lane = 2 * (cin_p + cout_p) * 4        # double-buffered, f32
    cap = max(128, (vmem_budget // bytes_per_lane) // 128 * 128)
    cap = min(lane_cap, cap)

    if hw <= cap:
        # Small / moderate images: one full-extent spatial block, batch-tiled so
        # each grid step moves enough data to hide the per-step overhead.
        tile_hw, hw_pad = hw, hw
        bt_cap = max(1, min(64, cap // max(hw, 1)))
        bt = 1
        for d in range(bt_cap, 0, -1):               # largest divisor of n <= cap
            if n % d == 0:
                bt = d
                break
        return bt, tile_hw, hw_pad

    # Large images: one image per step, big lane-dense spatial tiles.
    bt = 1
    tile_hw = None
    if hw % 128 == 0:
        t = cap
        while t >= 1024:                             # prefer an exact divisor
            if hw % t == 0:
                tile_hw = t
                break
            t -= 128
    if tile_hw is None:
        # No good divisor (hw not a 128-multiple, or 128*prime-like): use a
        # fixed tile and pad the spatial axis; never a full-extent block.
        tile_hw = cap
    hw_pad = _round_up(hw, tile_hw)
    return bt, tile_hw, hw_pad


def from_rgb(x_nchw, weight, bias, *, neg_slope=0.2, out_dtype=None):
    """FromRGB forward.

    x_nchw: (N, C_in, H, W)
    weight: (C_out, C_in, 1, 1)   (PyTorch conv weight layout)
    bias:   (C_out,)
    returns (N, C_out, H, W)
    """
    n, c_in, h, w = x_nchw.shape
    c_out = weight.shape[0]
    scale = float((2.0 / (c_in * 1 ** 2)) ** 0.5)
    hw = h * w
    out_dtype = x_nchw.dtype if out_dtype is None else out_dtype

    bt, tile_hw, hw_pad = _pick_tiles(n, hw, c_in, c_out)

    # Free reshape only -- no HBM transposes.  Pad spatial axis only if needed.
    x3 = x_nchw.reshape(n, c_in, hw)
    if hw_pad != hw:
        x3 = jnp.pad(x3, ((0, 0), (0, 0), (0, hw_pad - hw)))

    # Fold the WS scale once, in f32 (matches the reference for bf16 weights too).
    w_mat = weight.reshape(c_out, c_in).astype(jnp.float32) * scale
    b_mat = bias.reshape(c_out, 1).astype(jnp.float32)

    kernel = functools.partial(_fromrgb_kernel, neg_slope=neg_slope, bt=bt)

    out3 = pl.pallas_call(
        kernel,
        out_shape=jax.ShapeDtypeStruct((n, c_out, hw_pad), out_dtype),
        grid_spec=pltpu.PrefetchScalarGridSpec(
            num_scalar_prefetch=0,
            grid=(n // bt, hw_pad // tile_hw),
            in_specs=[
                pl.BlockSpec((bt, c_in, tile_hw), lambda i, j: (i, 0, j)),
                pl.BlockSpec((c_out, c_in), lambda i, j: (0, 0)),
                pl.BlockSpec((c_out, 1), lambda i, j: (0, 0)),
            ],
            out_specs=pl.BlockSpec((bt, c_out, tile_hw), lambda i, j: (i, 0, j)),
        ),
        compiler_params=pltpu.CompilerParams(
            dimension_semantics=("parallel", "parallel"),
            vmem_limit_bytes=32 * 1024 * 1024),
    )(x3, w_mat, b_mat)

    if hw_pad != hw:
        out3 = out3[:, :, :hw]
    return out3.reshape(n, c_out, h, w)


def from_rgb_ref(x_nchw, weight, bias, *, neg_slope=0.2):
    """Pure-JAX reference matching PyTorch semantics."""
    n, c_in, h, w = x_nchw.shape
    c_out = weight.shape[0]
    scale = (2.0 / (c_in * 1 ** 2)) ** 0.5
    w_mat = weight.reshape(c_out, c_in).astype(jnp.float32) * scale
    x3 = x_nchw.reshape(n, c_in, h * w).astype(jnp.float32)
    y = jnp.einsum('oc,ncs->nos', w_mat, x3) + bias.astype(jnp.float32)[None, :, None]
    y = jnp.where(y >= 0, y, neg_slope * y)
    return y.reshape(n, c_out, h, w).astype(x_nchw.dtype)


if __name__ == "__main__":
    key = jax.random.PRNGKey(0)
    k_x, k_w, k_x2 = jax.random.split(key, 3)

    # FromRGB: image (RGB) -> features
    batch, in_ch, out_ch, spatial = 2, 3, 32, 16

    x = jax.random.normal(k_x, (batch, in_ch, spatial, spatial),
                          dtype=jnp.float32)
    # WSConv2d __init__: weight ~ N(0,1), bias = 0
    weight = jax.random.normal(k_w, (out_ch, in_ch, 1, 1), dtype=jnp.float32)
    bias = jnp.zeros((out_ch,), dtype=jnp.float32)

    out = from_rgb(x, weight, bias)
    out = jax.block_until_ready(out)

    ref = from_rgb_ref(x, weight, bias)
    assert out.shape == (batch, out_ch, spatial, spatial), out.shape
    assert jnp.allclose(out, ref, atol=1e-5, rtol=1e-5), (
        float(jnp.max(jnp.abs(out - ref))))

    # Exercise the small / non-128-multiple spatial path (early ProGAN stage).
    x_small = jax.random.normal(k_x2, (batch, in_ch, 8, 8), dtype=jnp.float32)
    out_small = jax.block_until_ready(from_rgb(x_small, weight, bias))
    ref_small = from_rgb_ref(x_small, weight, bias)
    assert jnp.allclose(out_small, ref_small, atol=1e-5, rtol=1e-5), (
        float(jnp.max(jnp.abs(out_small - ref_small))))

    print("KERNEL_OK")
</pallas_src>

<mosaic_0001>
module attributes {stable_mosaic.version = 11 : i64} {
  func.func @_fromrgb_kernel(%arg0: i32, %arg1: i32, %arg2: memref<2x3x256xf32, #tpu.memory_space<vmem>>, %arg3: memref<32x3xf32, #tpu.memory_space<vmem>>, %arg4: memref<32x1xf32, #tpu.memory_space<vmem>>, %arg5: memref<2x32x256xf32, #tpu.memory_space<vmem>>) attributes {dimension_semantics = [#tpu.dimension_semantics<parallel>, #tpu.dimension_semantics<parallel>], iteration_bounds = array<i64: 1, 1>, scalar_prefetch = 0 : i64, scratch_operands = 0 : i64, tpu.core_type = #tpu.core_type<tc>, window_params = [{transform_indices = @transform_0, window_bounds = array<i64: 2, 3, 256>}, {pipeline_mode = #tpu.pipeline_mode<synchronous>, transform_indices = @transform_1, window_bounds = array<i64: 32, 3>}, {pipeline_mode = #tpu.pipeline_mode<synchronous>, transform_indices = @transform_2, window_bounds = array<i64: 32, 1>}, {transform_indices = @transform_3, window_bounds = array<i64: 2, 32, 256>}]} {
    %c0 = arith.constant 0 : index
    %c0_0 = arith.constant 0 : index
    %0 = vector.load %arg3[%c0, %c0_0] : memref<32x3xf32, #tpu.memory_space<vmem>>, vector<32x3xf32>
    %c0_1 = arith.constant 0 : index
    %c0_2 = arith.constant 0 : index
    %1 = vector.load %arg4[%c0_1, %c0_2] : memref<32x1xf32, #tpu.memory_space<vmem>>, vector<32x1xf32>
    %c0_3 = arith.constant 0 : index
    %c0_4 = arith.constant 0 : index
    %c0_5 = arith.constant 0 : index
    %2 = vector.load %arg2[%c0_3, %c0_4, %c0_5] : memref<2x3x256xf32, #tpu.memory_space<vmem>>, vector<1x3x256xf32>
    %3 = vector.shape_cast %2 : vector<1x3x256xf32> to vector<3x256xf32>
    %cst = arith.constant dense<0.000000e+00> : vector<32x256xf32>
    %4 = tpu.matmul %0, %3, %cst {dimension_numbers = #tpu.dot_dimension_numbers<[1], [0], [0], [1], [0, 0, 1, 1], [], []>} : vector<32x3xf32>, vector<3x256xf32>, vector<32x256xf32> -> vector<32x256xf32>
    %5 = vector.broadcast %1 : vector<32x1xf32> to vector<32x256xf32>
    %6 = arith.addf %4, %5 : vector<32x256xf32>
    %cst_6 = arith.constant 2.000000e-01 : f32
    %7 = vector.broadcast %cst_6 : f32 to vector<32x256xf32>
    %8 = arith.mulf %7, %6 : vector<32x256xf32>
    %9 = arith.maximumf %6, %8 : vector<32x256xf32>
    %c0_7 = arith.constant 0 : index
    %c0_8 = arith.constant 0 : index
    %c0_9 = arith.constant 0 : index
    %10 = vector.load %arg5[%c0_7, %c0_8, %c0_9] : memref<2x32x256xf32, #tpu.memory_space<vmem>>, vector<1x32x256xf32>
    %11 = vector.shape_cast %10 : vector<1x32x256xf32> to vector<32x256xf32>
    %12 = vector.shape_cast %9 : vector<32x256xf32> to vector<1x32x256xf32>
    tpu.vector_store %arg5[%c0_7, %c0_8, %c0_9], %12 {strides = array<i32>} : memref<2x32x256xf32, #tpu.memory_space<vmem>>, vector<1x32x256xf32>,
    %c1 = arith.constant 1 : index
    %c0_10 = arith.constant 0 : index
    %c0_11 = arith.constant 0 : index
    %13 = vector.load %arg2[%c1, %c0_10, %c0_11] : memref<2x3x256xf32, #tpu.memory_space<vmem>>, vector<1x3x256xf32>
    %14 = vector.shape_cast %13 : vector<1x3x256xf32> to vector<3x256xf32>
    %cst_12 = arith.constant dense<0.000000e+00> : vector<32x256xf32>
    %15 = tpu.matmul %0, %14, %cst_12 {dimension_numbers = #tpu.dot_dimension_numbers<[1], [0], [0], [1], [0, 0, 1, 1], [], []>} : vector<32x3xf32>, vector<3x256xf32>, vector<32x256xf32> -> vector<32x256xf32>
    %16 = vector.broadcast %1 : vector<32x1xf32> to vector<32x256xf32>
    %17 = arith.addf %15, %16 : vector<32x256xf32>
    %cst_13 = arith.constant 2.000000e-01 : f32
    %18 = vector.broadcast %cst_13 : f32 to vector<32x256xf32>
    %19 = arith.mulf %18, %17 : vector<32x256xf32>
    %20 = arith.maximumf %17, %19 : vector<32x256xf32>
    %c1_14 = arith.constant 1 : index
    %c0_15 = arith.constant 0 : index
    %c0_16 = arith.constant 0 : index
    %21 = vector.load %arg5[%c1_14, %c0_15, %c0_16] : memref<2x32x256xf32, #tpu.memory_space<vmem>>, vector<1x32x256xf32>
    %22 = vector.shape_cast %21 : vector<1x32x256xf32> to vector<32x256xf32>
    %23 = vector.shape_cast %20 : vector<32x256xf32> to vector<1x32x256xf32>
    tpu.vector_store %arg5[%c1_14, %c0_15, %c0_16], %23 {strides = array<i32>} : memref<2x32x256xf32, #tpu.memory_space<vmem>>, vector<1x32x256xf32>,
    return
  }
  func.func @transform_0(%arg0: i32, %arg1: i32) -> (i32, i32, i32) {
    %c0_i32 = arith.constant 0 : i32
    %c0_i32_0 = arith.constant 0 : i32
    return %arg0, %c0_i32, %arg1 : i32, i32, i32
  }
  func.func @transform_1(%arg0: i32, %arg1: i32) -> (i32, i32) {
    %c0_i32 = arith.constant 0 : i32
    %c0_i32_0 = arith.constant 0 : i32
    %c0_i32_1 = arith.constant 0 : i32
    return %c0_i32, %c0_i32_0 : i32, i32
  }
  func.func @transform_2(%arg0: i32, %arg1: i32) -> (i32, i32) {
    %c0_i32 = arith.constant 0 : i32
    %c0_i32_0 = arith.constant 0 : i32
    %c0_i32_1 = arith.constant 0 : i32
    return %c0_i32, %c0_i32_0 : i32, i32
  }
  func.func @transform_3(%arg0: i32, %arg1: i32) -> (i32, i32, i32) {
    %c0_i32 = arith.constant 0 : i32
    %c0_i32_0 = arith.constant 0 : i32
    return %arg0, %c0_i32, %arg1 : i32, i32, i32
  }
}

</mosaic_0001>

<llo_original>
// kernel: tpu_custom_call.1
$region0: #{tpu_custom_call.1}
  #allocation0 [shape = 'u32[]', space=smem, size = 0x4, offset = 0x4, fixed_abs, tag = 'smem constant byte address 0x4 - core index']
  #allocation1 [shape = 'u32[144,128]{1,0:T(1,128)}', space=vmem, size = 0x12000, scoped, tag = 'internal scratch']
  %s0 = inlined_call_operand.vmem [shape: f32[2,3,256], index: 0, kind: input, shape index: {}]
  %s1 = inlined_call_operand.vmem [shape: f32[32,3], index: 1, kind: input, shape index: {}]
  %s2 = inlined_call_operand.vmem [shape: f32[32,1], index: 2, kind: input, shape index: {}]
  %s3 = inlined_call_operand.hbm [shape: f32[2,32,256], index: 3, kind: output, shape index: {}]
  %s4 = sld [smem:[#allocation0]]
  $region22: #{tpu_custom_call.1} parent=0
    _
  %s6 = ssub.s32 1, %s4
  %s7 = scalar_select 0, %s6, %s4
  $region1: #{tpu_custom_call.1} parent=0
    #allocation2 [shape = 'u8[65536]{0}', space=vmem, size = 0x10000, scoped, tag = 'output window, operand 0, single buffered']
    #allocation3 [shape = 's32[1]{0}', space=sflag, size = 0x4, scoped, tag = 'scoped memory for tpu_custom_call.1']
    %8 = vsyncpa [#allocation3], 0
    // Predicated region
    $region2: #{tpu_custom_call.1} parent=1 // pred_check
      _
    $region3: #{tpu_custom_call.1} parent=1 // pred_check_branch
      %10 = sbr.rel (0) target = $region5
    $region4: #{tpu_custom_call.1} parent=1 // pred_region
      _
    $region5: #{tpu_custom_call.1} parent=1 // pred_fallthru
      _
    // Predicated region
    $region6: #{tpu_custom_call.1} parent=1 // pred_check
      _
    $region7: #{tpu_custom_call.1} parent=1 // pred_check_branch
      %12 = sbr.rel (0) target = $region9
    $region8: #{tpu_custom_call.1} parent=1 // pred_region
      _
    $region9: #{tpu_custom_call.1} parent=1 // pred_fallthru
      _
    // Predicated region
    $region10: #{tpu_custom_call.1} parent=1 // pred_check
      _
    $region11: #{tpu_custom_call.1} parent=1 // pred_check_branch
      %14 = sbr.rel (0) target = $region13
    $region12: #{tpu_custom_call.1} parent=1 // pred_region
      _
    $region13: #{tpu_custom_call.1} parent=1 // pred_fallthru
      _
    %v15 = vld [vmem:[%s1] sm:$0xff]
    %v16 = vld [vmem:[%s1 + $0x8] sm:$0xff]
    %v17 = vld [vmem:[%s1 + $0x10] sm:$0xff]
    %v18 = vld [vmem:[%s1 + $0x18] sm:$0xff]
    %v19 = vld [vmem:[%s2] sm:$0xff]
    %v20 = vld [vmem:[%s2 + $0x8] sm:$0xff]
    %v21 = vld [vmem:[%s2 + $0x10] sm:$0xff]
    %v22 = vld [vmem:[%s2 + $0x18] sm:$0xff]
    %v23 = vld [vmem:[%s0] sm:$0x77]
    %25 = vset.pattern.permute.xlu0 0
    %26 = vperm.xlu0 %25, %v19
    %v27 = vpop.permute.xlu0 %26
    %30 = vset.pattern.permute.xlu0 0
    %31 = vperm.xlu0 %30, %v20
    %v32 = vpop.permute.xlu0 %31
    %35 = vset.pattern.permute.xlu0 0
    %36 = vperm.xlu0 %35, %v21
    %v37 = vpop.permute.xlu0 %36
    %40 = vset.pattern.permute.xlu0 0
    %41 = vperm.xlu0 %40, %v22
    %v42 = vpop.permute.xlu0 %41
    %v45 = vcombine.high %v23, %v23
    %vm46 = vcmask 23552
    %v48 = vsel %vm46, %v15, 0
    %v51 = vsel %vm46, %v16, 0
    %v54 = vsel %vm46, %v17, 0
    %v57 = vsel %vm46, %v18, 0
    %vm59 = vcmask 1042432
    %v60 = vsel %vm59, %v23, 0
    %v62 = vsel %vm59, %v45, 0
    %64 = vmatprep.subr.mxu0 %v62
    %65 = vmatpush1.msra.mxu0 %v60
    %66 = vmatprep.subr.mxu0 0.0
    %67 = vmatpush1.msra.mxu0 0.0
    %68 = vmatprep.subr.mxu0 0.0
    %69 = vmatpush1.msra.mxu0 0.0
    %70 = vmatprep.subr.mxu0 0.0
    %71 = vmatpush1.msra.mxu0 0.0
    %72 = vmatprep.subr.mxu0 0.0
    %73 = vmatpush1.msra.mxu0 0.0
    %74 = vmatprep.subr.mxu0 0.0
    %75 = vmatpush1.msra.mxu0 0.0
    %76 = vmatprep.subr.mxu0 0.0
    %77 = vmatpush1.msra.mxu0 0.0
    %78 = vmatprep.subr.mxu0 0.0
    %79 = vmatpush1.msra.mxu0 0.0
    %80 = vmatprep.subr.mxu0 0.0
    %81 = vmatpush1.msra.mxu0 0.0
    %82 = vmatprep.subr.mxu0 0.0
    %83 = vmatpush1.msra.mxu0 0.0
    %84 = vmatprep.subr.mxu0 0.0
    %85 = vmatpush1.msra.mxu0 0.0
    %86 = vmatprep.subr.mxu0 0.0
    %87 = vmatpush1.msra.mxu0 0.0
    %88 = vmatprep.subr.mxu0 0.0
    %89 = vmatpush1.msra.mxu0 0.0
    %90 = vmatprep.subr.mxu0 0.0
    %91 = vmatpush1.msra.mxu0 0.0
    %92 = vmatprep.subr.mxu0 0.0
    %93 = vmatpush1.msra.mxu0 0.0
    %94 = vmatprep.subr.mxu0 0.0
    %95 = vmatpush1.msra.mxu0 0.0
    %96 = vmatprep.subr.mxu0 0.0
    %97 = vmatpush1.msra.mxu0 0.0
    %98 = vmatprep.subr.mxu0 0.0
    %99 = vmatpush1.msra.mxu0 0.0
    %100 = vmatprep.subr.mxu0 0.0
    %101 = vmatpush1.msra.mxu0 0.0
    %102 = vmatprep.subr.mxu0 0.0
    %103 = vmatpush1.msra.mxu0 0.0
    %104 = vmatprep.subr.mxu0 0.0
    %105 = vmatpush1.msra.mxu0 0.0
    %106 = vmatprep.subr.mxu0 0.0
    %107 = vmatpush1.msra.mxu0 0.0
    %108 = vmatprep.subr.mxu0 0.0
    %109 = vmatpush1.msra.mxu0 0.0
    %110 = vmatprep.subr.mxu0 0.0
    %111 = vmatpush1.msra.mxu0 0.0
    %112 = vmatprep.subr.mxu0 0.0
    %113 = vmatpush1.msra.mxu0 0.0
    %114 = vmatprep.subr.mxu0 0.0
    %115 = vmatpush1.msra.mxu0 0.0
    %116 = vmatprep.subr.mxu0 0.0
    %117 = vmatpush1.msra.mxu0 0.0
    %118 = vmatprep.subr.mxu0 0.0
    %119 = vmatpush1.msra.mxu0 0.0
    %120 = vmatprep.subr.mxu0 0.0
    %121 = vmatpush1.msra.mxu0 0.0
    %122 = vmatprep.subr.mxu0 0.0
    %123 = vmatpush1.msra.mxu0 0.0
    %124 = vmatprep.subr.mxu0 0.0
    %125 = vmatpush1.msra.mxu0 0.0
    %126 = vmatprep.subr.mxu0 0.0
    %127 = vmatpush1.msra.mxu0 0.0
    %128 = vmatprep.mubr.f32.mxu0 0.0
    %129 = vmatmul.mubr.f32.gmra.mrb[0].mxu0 %v48
    %v130 = vpop.f32.mrb[0].mxu0
    %v131 = vadd.f32 %v27, %v130
    %v132 = vpop.f32.mrb[0].mxu0
    %v133 = vadd.f32 %v27, %v132
    %134 = vmatprep.mubr.f32.mxu0 0.0
    %135 = vmatmul.mubr.f32.gmra.mrb[0].mxu0 %v51
    %v136 = vpop.f32.mrb[0].mxu0
    %v137 = vadd.f32 %v32, %v136
    %v138 = vpop.f32.mrb[0].mxu0
    %v139 = vadd.f32 %v32, %v138
    %140 = vmatprep.mubr.f32.mxu0 0.0
    %141 = vmatmul.mubr.f32.gmra.mrb[0].mxu0 %v54
    %v142 = vpop.f32.mrb[0].mxu0
    %v143 = vadd.f32 %v37, %v142
    %v144 = vpop.f32.mrb[0].mxu0
    %v145 = vadd.f32 %v37, %v144
    %146 = vmatprep.mubr.f32.mxu0 0.0
    %147 = vmatmul.mubr.f32.gmra.mrb[0].mxu0 %v57
    %v148 = vpop.f32.mrb[0].mxu0
    %v149 = vadd.f32 %v42, %v148
    %v150 = vpop.f32.mrb[0].mxu0
    %v151 = vadd.f32 %v42, %v150
    %152 = vdwg.mxu0
    %v153 = vmul.f32 %v131, 0.2
    %v154 = vmul.f32 %v133, 0.2
    %v155 = vmul.f32 %v137, 0.2
    %v156 = vmul.f32 %v139, 0.2
    %v157 = vmul.f32 %v143, 0.2
    %v158 = vmul.f32 %v145, 0.2
    %v159 = vmul.f32 %v149, 0.2
    %v160 = vmul.f32 %v151, 0.2
    %v161 = vmax.f32 %v131, %v153
    %v162 = vmax.f32 %v133, %v154
    %v163 = vmax.f32 %v137, %v155
    %v164 = vmax.f32 %v139, %v156
    %v165 = vmax.f32 %v143, %v157
    %v166 = vmax.f32 %v145, %v158
    %v167 = vmax.f32 %v149, %v159
    %v168 = vmax.f32 %v151, %v160
    %169 = vst [vmem:[#allocation2] sm:$0xff] %v161
    %170 = vst [vmem:[#allocation2 + $0x8] sm:$0xff] %v162
    %171 = vst [vmem:[#allocation2 + $0x10] sm:$0xff] %v163
    %172 = vst [vmem:[#allocation2 + $0x18] sm:$0xff] %v164
    %173 = vst [vmem:[#allocation2 + $0x20] sm:$0xff] %v165
    %174 = vst [vmem:[#allocation2 + $0x28] sm:$0xff] %v166
    %175 = vst [vmem:[#allocation2 + $0x30] sm:$0xff] %v167
    %176 = vst [vmem:[#allocation2 + $0x38] sm:$0xff] %v168
    %s177 = scalar_lea.vmem %s0, 8
    %v178 = vld [vmem:[%s177] sm:$0x77]
    %v180 = vcombine.high %v178, %v178
    %v181 = vsel %vm59, %v178, 0
    %v183 = vsel %vm59, %v180, 0
    %185 = vmatprep.subr.mxu0 %v183
    %186 = vmatpush1.msra.mxu0 %v181
    %187 = vmatprep.subr.mxu0 0.0
    %188 = vmatpush1.msra.mxu0 0.0
    %189 = vmatprep.subr.mxu0 0.0
    %190 = vmatpush1.msra.mxu0 0.0
    %191 = vmatprep.subr.mxu0 0.0
    %192 = vmatpush1.msra.mxu0 0.0
    %193 = vmatprep.subr.mxu0 0.0
    %194 = vmatpush1.msra.mxu0 0.0
    %195 = vmatprep.subr.mxu0 0.0
    %196 = vmatpush1.msra.mxu0 0.0
    %197 = vmatprep.subr.mxu0 0.0
    %198 = vmatpush1.msra.mxu0 0.0
    %199 = vmatprep.subr.mxu0 0.0
    %200 = vmatpush1.msra.mxu0 0.0
    %201 = vmatprep.subr.mxu0 0.0
    %202 = vmatpush1.msra.mxu0 0.0
    %203 = vmatprep.subr.mxu0 0.0
    %204 = vmatpush1.msra.mxu0 0.0
    %205 = vmatprep.subr.mxu0 0.0
    %206 = vmatpush1.msra.mxu0 0.0
    %207 = vmatprep.subr.mxu0 0.0
    %208 = vmatpush1.msra.mxu0 0.0
    %209 = vmatprep.subr.mxu0 0.0
    %210 = vmatpush1.msra.mxu0 0.0
    %211 = vmatprep.subr.mxu0 0.0
    %212 = vmatpush1.msra.mxu0 0.0
    %213 = vmatprep.subr.mxu0 0.0
    %214 = vmatpush1.msra.mxu0 0.0
    %215 = vmatprep.subr.mxu0 0.0
    %216 = vmatpush1.msra.mxu0 0.0
    %217 = vmatprep.subr.mxu0 0.0
    %218 = vmatpush1.msra.mxu0 0.0
    %219 = vmatprep.subr.mxu0 0.0
    %220 = vmatpush1.msra.mxu0 0.0
    %221 = vmatprep.subr.mxu0 0.0
    %222 = vmatpush1.msra.mxu0 0.0
    %223 = vmatprep.subr.mxu0 0.0
    %224 = vmatpush1.msra.mxu0 0.0
    %225 = vmatprep.subr.mxu0 0.0
    %226 = vmatpush1.msra.mxu0 0.0
    %227 = vmatprep.subr.mxu0 0.0
    %228 = vmatpush1.msra.mxu0 0.0
    %229 = vmatprep.subr.mxu0 0.0
    %230 = vmatpush1.msra.mxu0 0.0
    %231 = vmatprep.subr.mxu0 0.0
    %232 = vmatpush1.msra.mxu0 0.0
    %233 = vmatprep.subr.mxu0 0.0
    %234 = vmatpush1.msra.mxu0 0.0
    %235 = vmatprep.subr.mxu0 0.0
    %236 = vmatpush1.msra.mxu0 0.0
    %237 = vmatprep.subr.mxu0 0.0
    %238 = vmatpush1.msra.mxu0 0.0
    %239 = vmatprep.subr.mxu0 0.0
    %240 = vmatpush1.msra.mxu0 0.0
    %241 = vmatprep.subr.mxu0 0.0
    %242 = vmatpush1.msra.mxu0 0.0
    %243 = vmatprep.subr.mxu0 0.0
    %244 = vmatpush1.msra.mxu0 0.0
    %245 = vmatprep.subr.mxu0 0.0
    %246 = vmatpush1.msra.mxu0 0.0
    %247 = vmatprep.subr.mxu0 0.0
    %248 = vmatpush1.msra.mxu0 0.0
    %249 = vmatprep.mubr.f32.mxu0 0.0
    %250 = vmatmul.mubr.f32.gmra.mrb[0].mxu0 %v48
    %v251 = vpop.f32.mrb[0].mxu0
    %v252 = vadd.f32 %v27, %v251
    %v253 = vpop.f32.mrb[0].mxu0
    %v254 = vadd.f32 %v27, %v253
    %255 = vmatprep.mubr.f32.mxu0 0.0
    %256 = vmatmul.mubr.f32.gmra.mrb[0].mxu0 %v51
    %v257 = vpop.f32.mrb[0].mxu0
    %v258 = vadd.f32 %v32, %v257
    %v259 = vpop.f32.mrb[0].mxu0
    %v260 = vadd.f32 %v32, %v259
    %261 = vmatprep.mubr.f32.mxu0 0.0
    %262 = vmatmul.mubr.f32.gmra.mrb[0].mxu0 %v54
    %v263 = vpop.f32.mrb[0].mxu0
    %v264 = vadd.f32 %v37, %v263
    %v265 = vpop.f32.mrb[0].mxu0
    %v266 = vadd.f32 %v37, %v265
    %267 = vmatprep.mubr.f32.mxu0 0.0
    %268 = vmatmul.mubr.f32.gmra.mrb[0].mxu0 %v57
    %v269 = vpop.f32.mrb[0].mxu0
    %v270 = vadd.f32 %v42, %v269
    %v271 = vpop.f32.mrb[0].mxu0
    %v272 = vadd.f32 %v42, %v271
    %273 = vdwg.mxu0
    %v274 = vmul.f32 %v252, 0.2
    %v275 = vmul.f32 %v254, 0.2
    %v276 = vmul.f32 %v258, 0.2
    %v277 = vmul.f32 %v260, 0.2
    %v278 = vmul.f32 %v264, 0.2
    %v279 = vmul.f32 %v266, 0.2
    %v280 = vmul.f32 %v270, 0.2
    %v281 = vmul.f32 %v272, 0.2
    %v282 = vmax.f32 %v252, %v274
    %v283 = vmax.f32 %v254, %v275
    %v284 = vmax.f32 %v258, %v276
    %v285 = vmax.f32 %v260, %v277
    %v286 = vmax.f32 %v264, %v278
    %v287 = vmax.f32 %v266, %v279
    %v288 = vmax.f32 %v270, %v280
    %v289 = vmax.f32 %v272, %v281
    %s290 = scalar_lea.vmem [#allocation2], 64
    %291 = vst [vmem:[%s290] sm:$0xff] %v282
    %292 = vst [vmem:[%s290 + $0x8] sm:$0xff] %v283
    %293 = vst [vmem:[%s290 + $0x10] sm:$0xff] %v284
    %294 = vst [vmem:[%s290 + $0x18] sm:$0xff] %v285
    %295 = vst [vmem:[%s290 + $0x20] sm:$0xff] %v286
    %296 = vst [vmem:[%s290 + $0x28] sm:$0xff] %v287
    %297 = vst [vmem:[%s290 + $0x30] sm:$0xff] %v288
    %298 = vst [vmem:[%s290 + $0x38] sm:$0xff] %v289
    // Predicated region
    $region14: #{tpu_custom_call.1} parent=1 // pred_check
      _
    $region15: #{tpu_custom_call.1} parent=1 // pred_check_branch
      %300 = sbr.rel (0) target = $region17
    $region16: #{tpu_custom_call.1} parent=1 // pred_region
      %s302 = ssub.s32 2048, 2048
      %303 = vsyncadd [#allocation3], %s302
      %s304 = sshll.u32 [#allocation2], 4
      %s305 = int_to_ptr.vmem [resolvable:$true] %s304
      %310 = dma.vmem_to_hbm [thread:$0]  %s305, 2048, %s3, [#allocation3], 256, 256, 16
    $region17: #{tpu_custom_call.1} parent=1 // pred_fallthru
      _
    // Predicated region
    $region18: #{tpu_custom_call.1} parent=1 // pred_check
      _
    $region19: #{tpu_custom_call.1} parent=1 // pred_check_branch
      %312 = sbr.rel (0) target = $region21
    $region20: #{tpu_custom_call.1} parent=1 // pred_region
      %313 = dma.done [#allocation3], 2048
    $region21: #{tpu_custom_call.1} parent=1 // pred_fallthru
      _
    %314 = vsyncpa [#allocation3], 1

</llo_original>
